<compile_context>
chip_gen: v5e
topology: v5e:2x2
jax: 0.10.0
libtpu: 0.0.40
codegen_flags: <defaults>
</compile_context>

<pallas_src>
import jax
import jax.numpy as jnp
from jax import lax
from jax.experimental import pallas as pl
from jax.experimental.pallas import tpu as pltpu

SUB = 256            # batch rows per inner compute sub-tile (keeps live vregs bounded)
DEFAULT_TILE = 8192  # batch rows per grid step (DMA granularity)
MAX_TILE = 32768     # VMEM-safe cap (~35 MiB of buffers on v7x's 64 MiB/TC)


def _round_up(v, m):
    return ((v + m - 1) // m) * m


def qnet_kernel(x_ref,
                w1_ref, b1_ref,
                w2_ref, b2_ref,
                w3_ref, b3_ref,
                w4t_ref, b4t_ref,
                ot_ref):
    # One grid step owns `tb` batch rows (already in VMEM); loop over SUB-row sub-tiles.
    n_sub = x_ref.shape[0] // SUB

    def body(t, carry):
        r0 = pl.multiple_of(t * SUB, SUB)
        x = x_ref[pl.ds(r0, SUB), :].astype(jnp.bfloat16)                  # (SUB, 12)
        h = jnp.dot(x, w1_ref[...], preferred_element_type=jnp.float32) + b1_ref[...]
        h = jnp.maximum(h, 0.0).astype(jnp.bfloat16)                       # (SUB, 64)
        h = jnp.dot(h, w2_ref[...], preferred_element_type=jnp.float32) + b2_ref[...]
        h = jnp.maximum(h, 0.0).astype(jnp.bfloat16)                       # (SUB, 128)
        h = jnp.dot(h, w3_ref[...], preferred_element_type=jnp.float32) + b3_ref[...]
        h = jnp.maximum(h, 0.0).astype(jnp.bfloat16)                       # (SUB, 32)
        # Final layer transposed: (4,32) x (SUB,32)^T -> (4, SUB), batch on lanes
        # (lane-dense stores + dense writeback DMA instead of a (SUB,4) masked store).
        ot = lax.dot_general(w4t_ref[...], h, (((1,), (1,)), ((), ())),
                             preferred_element_type=jnp.float32) + b4t_ref[...]
        ot_ref[t, :, :] = ot                                               # (4, SUB) f32
        return carry

    lax.fori_loop(0, n_sub, body, 0)


def qnet_forward(data, params, tile_b=DEFAULT_TILE):
    """Equivalent of QNet.forward: data.view(-1, 12) -> 4 ReLU-MLP layers -> (B, 4) f32."""
    x = data.reshape(-1, 12)
    if x.dtype != jnp.float32:
        x = x.astype(jnp.float32)
    B = x.shape[0]
    (w1, b1), (w2, b2), (w3, b3), (w4, b4) = params

    # Batch tile: multiple of SUB, <= tile_b, <= MAX_TILE, and <= ~ceil(B/2) so that
    # grid >= 2 whenever possible (gives both TensorCores work under "parallel").
    tb = max(SUB, _round_up(pl.cdiv(B, 2), SUB))
    tb = min(tb, _round_up(int(tile_b), SUB), MAX_TILE)
    grid_b = pl.cdiv(B, tb)
    n_sub_total = pl.cdiv(B, SUB)

    # bf16 weights for native MXU throughput (tiny, one-time); f32 biases.
    # Last layer pre-transposed in the wrapper: W4^T is (4, 32), bias (4, 1).
    w1b, w2b, w3b = (w.astype(jnp.bfloat16) for w in (w1, w2, w3))
    w4t = w4.T.astype(jnp.bfloat16)
    b1f, b2f, b3f = (b.reshape(1, -1).astype(jnp.float32) for b in (b1, b2, b3))
    b4t = b4.reshape(-1, 1).astype(jnp.float32)

    const2 = lambda i: (0, 0)   # weights/biases: same block every step -> VMEM-resident
    in_specs = [
        pl.BlockSpec((tb, 12), lambda i: (i, 0)),      # x tiled along batch (f32 in HBM)
        pl.BlockSpec((12, 64), const2),  pl.BlockSpec((1, 64), const2),
        pl.BlockSpec((64, 128), const2), pl.BlockSpec((1, 128), const2),
        pl.BlockSpec((128, 32), const2), pl.BlockSpec((1, 32), const2),
        pl.BlockSpec((4, 32), const2),   pl.BlockSpec((4, 1), const2),
    ]
    # Lane-dense output: sub-tile index on the leading dim, classes on sublanes,
    # SUB batch rows on lanes.
    out_spec = pl.BlockSpec((tb // SUB, 4, SUB), lambda i: (i, 0, 0))

    flops = 2 * B * (12 * 64 + 64 * 128 + 128 * 32 + 32 * 4)
    bytes_accessed = (B * 12 * 4                      # x read (f32)
                      + n_sub_total * 4 * SUB * 4     # output write (f32)
                      + (12 * 64 + 64 * 128 + 128 * 32 + 32 * 4) * 2   # bf16 weights
                      + (64 + 128 + 32 + 4) * 4)                        # f32 biases
    cost = pl.CostEstimate(flops=flops, transcendentals=0, bytes_accessed=bytes_accessed)

    out_t = pl.pallas_call(
        qnet_kernel,
        out_shape=jax.ShapeDtypeStruct((n_sub_total, 4, SUB), jnp.float32),
        grid=(grid_b,),
        in_specs=in_specs,
        out_specs=out_spec,
        compiler_params=pltpu.CompilerParams(
            dimension_semantics=("parallel",),          # megacore sharding on v7x
            vmem_limit_bytes=48 * 1024 * 1024,          # <= v7x physical 64 MiB/TC
        ),
        cost_estimate=cost,
    )(x, w1b, b1f, w2b, b2f, w3b, b3f, w4t, b4t)

    # (n_sub, 4, SUB) -> (n_sub, SUB, 4) -> (B, 4).  Only the small transpose is a real
    # pass (16 B/row each way); the reshape and slice are metadata-only.
    return out_t.transpose(0, 2, 1).reshape(-1, 4)[:B]


def init_params(key):
    """PyTorch nn.Linear-style init (uniform +-1/sqrt(fan_in)); W stored [in, out]."""
    dims = [(12, 64), (64, 128), (128, 32), (32, 4)]
    params = []
    for (fan_in, fan_out) in dims:
        key, kw, kb = jax.random.split(key, 3)
        bound = 1.0 / (fan_in ** 0.5)
        w = jax.random.uniform(kw, (fan_in, fan_out), jnp.float32, -bound, bound)
        b = jax.random.uniform(kb, (1, fan_out), jnp.float32, -bound, bound)
        params.append((w, b))
    return params


def qnet_reference(data, params):
    x = data.reshape(-1, 12).astype(jnp.float32)
    (w1, b1), (w2, b2), (w3, b3), (w4, b4) = params
    h = jnp.maximum(x @ w1 + b1, 0.0)
    h = jnp.maximum(h @ w2 + b2, 0.0)
    h = jnp.maximum(h @ w3 + b3, 0.0)
    return h @ w4 + b4


if __name__ == "__main__":
    key = jax.random.PRNGKey(0)
    key, kd1, kd2 = jax.random.split(key, 3)
    params = init_params(key)

    # Test 1: data.view(-1, 12) semantics -> (8, 12); single grid step, single sub-tile,
    # very partial block (only 8 of 256 rows valid).
    data1 = jax.random.normal(kd1, (2, 4, 12), jnp.float32)
    out1 = jax.block_until_ready(qnet_forward(data1, params))
    ref1 = qnet_reference(data1, params)
    assert out1.shape == (8, 4), out1.shape
    # bf16 operands with f32 accumulation: loosened tolerance vs the f32 reference.
    assert jnp.allclose(out1, ref1, atol=2e-2, rtol=2e-2), "mismatch vs reference (test 1)"

    # Test 2: ragged batch (600 rows) -> tb=512: 2 grid steps x 2 inner sub-tiles,
    # partial tail block handled without any wrapper-side padding.
    data2 = jax.random.normal(kd2, (600, 12), jnp.float32)
    out2 = jax.block_until_ready(qnet_forward(data2, params))
    ref2 = qnet_reference(data2, params)
    assert out2.shape == (600, 4), out2.shape
    assert jnp.allclose(out2, ref2, atol=2e-2, rtol=2e-2), "mismatch vs reference (test 2)"

    print("KERNEL_OK")
</pallas_src>

<mosaic_0001>
module attributes {stable_mosaic.version = 11 : i64} {
  func.func @qnet_kernel(%arg0: i32, %arg1: memref<256x12xf32, #tpu.memory_space<vmem>>, %arg2: memref<12x64xbf16, #tpu.memory_space<vmem>>, %arg3: memref<1x64xf32, #tpu.memory_space<vmem>>, %arg4: memref<64x128xbf16, #tpu.memory_space<vmem>>, %arg5: memref<1x128xf32, #tpu.memory_space<vmem>>, %arg6: memref<128x32xbf16, #tpu.memory_space<vmem>>, %arg7: memref<1x32xf32, #tpu.memory_space<vmem>>, %arg8: memref<4x32xbf16, #tpu.memory_space<vmem>>, %arg9: memref<4x1xf32, #tpu.memory_space<vmem>>, %arg10: memref<1x4x256xf32, #tpu.memory_space<vmem>>) attributes {dimension_semantics = [#tpu.dimension_semantics<parallel>], iteration_bounds = array<i64: 1>, scalar_prefetch = 0 : i64, scratch_operands = 0 : i64, tpu.core_type = #tpu.core_type<tc>, window_params = [{transform_indices = @transform_0, window_bounds = array<i64: 256, 12>}, {pipeline_mode = #tpu.pipeline_mode<synchronous>, transform_indices = @transform_1, window_bounds = array<i64: 12, 64>}, {pipeline_mode = #tpu.pipeline_mode<synchronous>, transform_indices = @transform_2, window_bounds = array<i64: 1, 64>}, {pipeline_mode = #tpu.pipeline_mode<synchronous>, transform_indices = @transform_3, window_bounds = array<i64: 64, 128>}, {pipeline_mode = #tpu.pipeline_mode<synchronous>, transform_indices = @transform_4, window_bounds = array<i64: 1, 128>}, {pipeline_mode = #tpu.pipeline_mode<synchronous>, transform_indices = @transform_5, window_bounds = array<i64: 128, 32>}, {pipeline_mode = #tpu.pipeline_mode<synchronous>, transform_indices = @transform_6, window_bounds = array<i64: 1, 32>}, {pipeline_mode = #tpu.pipeline_mode<synchronous>, transform_indices = @transform_7, window_bounds = array<i64: 4, 32>}, {pipeline_mode = #tpu.pipeline_mode<synchronous>, transform_indices = @transform_8, window_bounds = array<i64: 4, 1>}, {transform_indices = @transform_9, window_bounds = array<i64: 1, 4, 256>}]} {
    %c0_i32 = arith.constant 0 : i32
    %c256_i32 = arith.constant 256 : i32
    %0 = arith.muli %c0_i32, %c256_i32 : i32
    %1 = tpu.assume_multiple %0, 256 : i32
    %2 = arith.index_cast %1 : i32 to index
    %c0 = arith.constant 0 : index
    %3 = vector.load %arg1[%2, %c0] : memref<256x12xf32, #tpu.memory_space<vmem>>, vector<256x12xf32>
    %4 = arith.truncf %3 : vector<256x12xf32> to vector<256x12xbf16>
    %c0_0 = arith.constant 0 : index
    %c0_1 = arith.constant 0 : index
    %5 = vector.load %arg2[%c0_0, %c0_1] : memref<12x64xbf16, #tpu.memory_space<vmem>>, vector<12x64xbf16>
    %cst = arith.constant dense<0.000000e+00> : vector<256x64xf32>
    %6 = tpu.matmul %4, %5, %cst {dimension_numbers = #tpu.dot_dimension_numbers<[1], [0], [0], [1], [0, 0, 1, 1], [], []>} : vector<256x12xbf16>, vector<12x64xbf16>, vector<256x64xf32> -> vector<256x64xf32>
    %c0_2 = arith.constant 0 : index
    %c0_3 = arith.constant 0 : index
    %7 = vector.load %arg3[%c0_2, %c0_3] : memref<1x64xf32, #tpu.memory_space<vmem>>, vector<1x64xf32>
    %8 = vector.broadcast %7 : vector<1x64xf32> to vector<256x64xf32>
    %9 = arith.addf %6, %8 : vector<256x64xf32>
    %cst_4 = arith.constant 0.000000e+00 : f32
    %10 = vector.broadcast %cst_4 : f32 to vector<256x64xf32>
    %11 = arith.maximumf %9, %10 : vector<256x64xf32>
    %12 = arith.truncf %11 : vector<256x64xf32> to vector<256x64xbf16>
    %c0_5 = arith.constant 0 : index
    %c0_6 = arith.constant 0 : index
    %13 = vector.load %arg4[%c0_5, %c0_6] : memref<64x128xbf16, #tpu.memory_space<vmem>>, vector<64x128xbf16>
    %cst_7 = arith.constant dense<0.000000e+00> : vector<256x128xf32>
    %14 = tpu.matmul %12, %13, %cst_7 {dimension_numbers = #tpu.dot_dimension_numbers<[1], [0], [0], [1], [0, 0, 1, 1], [], []>} : vector<256x64xbf16>, vector<64x128xbf16>, vector<256x128xf32> -> vector<256x128xf32>
    %c0_8 = arith.constant 0 : index
    %c0_9 = arith.constant 0 : index
    %15 = vector.load %arg5[%c0_8, %c0_9] : memref<1x128xf32, #tpu.memory_space<vmem>>, vector<1x128xf32>
    %16 = vector.broadcast %15 : vector<1x128xf32> to vector<256x128xf32>
    %17 = arith.addf %14, %16 : vector<256x128xf32>
    %cst_10 = arith.constant 0.000000e+00 : f32
    %18 = vector.broadcast %cst_10 : f32 to vector<256x128xf32>
    %19 = arith.maximumf %17, %18 : vector<256x128xf32>
    %20 = arith.truncf %19 : vector<256x128xf32> to vector<256x128xbf16>
    %c0_11 = arith.constant 0 : index
    %c0_12 = arith.constant 0 : index
    %21 = vector.load %arg6[%c0_11, %c0_12] : memref<128x32xbf16, #tpu.memory_space<vmem>>, vector<128x32xbf16>
    %cst_13 = arith.constant dense<0.000000e+00> : vector<256x32xf32>
    %22 = tpu.matmul %20, %21, %cst_13 {dimension_numbers = #tpu.dot_dimension_numbers<[1], [0], [0], [1], [0, 0, 1, 1], [], []>} : vector<256x128xbf16>, vector<128x32xbf16>, vector<256x32xf32> -> vector<256x32xf32>
    %c0_14 = arith.constant 0 : index
    %c0_15 = arith.constant 0 : index
    %23 = vector.load %arg7[%c0_14, %c0_15] : memref<1x32xf32, #tpu.memory_space<vmem>>, vector<1x32xf32>
    %24 = vector.broadcast %23 : vector<1x32xf32> to vector<256x32xf32>
    %25 = arith.addf %22, %24 : vector<256x32xf32>
    %cst_16 = arith.constant 0.000000e+00 : f32
    %26 = vector.broadcast %cst_16 : f32 to vector<256x32xf32>
    %27 = arith.maximumf %25, %26 : vector<256x32xf32>
    %28 = arith.truncf %27 : vector<256x32xf32> to vector<256x32xbf16>
    %c0_17 = arith.constant 0 : index
    %c0_18 = arith.constant 0 : index
    %29 = vector.load %arg8[%c0_17, %c0_18] : memref<4x32xbf16, #tpu.memory_space<vmem>>, vector<4x32xbf16>
    %cst_19 = arith.constant dense<0.000000e+00> : vector<4x256xf32>
    %30 = tpu.matmul %29, %28, %cst_19 {dimension_numbers = #tpu.dot_dimension_numbers<[1], [1], [0], [0], [0, 0, 1, 0], [], []>} : vector<4x32xbf16>, vector<256x32xbf16>, vector<4x256xf32> -> vector<4x256xf32>
    %c0_20 = arith.constant 0 : index
    %c0_21 = arith.constant 0 : index
    %31 = vector.load %arg9[%c0_20, %c0_21] : memref<4x1xf32, #tpu.memory_space<vmem>>, vector<4x1xf32>
    %32 = vector.broadcast %31 : vector<4x1xf32> to vector<4x256xf32>
    %33 = arith.addf %30, %32 : vector<4x256xf32>
    %34 = arith.index_cast %c0_i32 : i32 to index
    %c0_22 = arith.constant 0 : index
    %c0_23 = arith.constant 0 : index
    %35 = vector.load %arg10[%34, %c0_22, %c0_23] : memref<1x4x256xf32, #tpu.memory_space<vmem>>, vector<1x4x256xf32>
    %36 = vector.shape_cast %35 : vector<1x4x256xf32> to vector<4x256xf32>
    %37 = vector.shape_cast %33 : vector<4x256xf32> to vector<1x4x256xf32>
    tpu.vector_store %arg10[%34, %c0_22, %c0_23], %37 {strides = array<i32>} : memref<1x4x256xf32, #tpu.memory_space<vmem>>, vector<1x4x256xf32>,
    %c1_i32 = arith.constant 1 : i32
    return
  }
  func.func @transform_0(%arg0: i32) -> (i32, i32) {
    %c0_i32 = arith.constant 0 : i32
    %c0_i32_0 = arith.constant 0 : i32
    return %arg0, %c0_i32 : i32, i32
  }
  func.func @transform_1(%arg0: i32) -> (i32, i32) {
    %c0_i32 = arith.constant 0 : i32
    %c0_i32_0 = arith.constant 0 : i32
    %c0_i32_1 = arith.constant 0 : i32
    return %c0_i32, %c0_i32_0 : i32, i32
  }
  func.func @transform_2(%arg0: i32) -> (i32, i32) {
    %c0_i32 = arith.constant 0 : i32
    %c0_i32_0 = arith.constant 0 : i32
    %c0_i32_1 = arith.constant 0 : i32
    return %c0_i32, %c0_i32_0 : i32, i32
  }
  func.func @transform_3(%arg0: i32) -> (i32, i32) {
    %c0_i32 = arith.constant 0 : i32
    %c0_i32_0 = arith.constant 0 : i32
    %c0_i32_1 = arith.constant 0 : i32
    return %c0_i32, %c0_i32_0 : i32, i32
  }
  func.func @transform_4(%arg0: i32) -> (i32, i32) {
    %c0_i32 = arith.constant 0 : i32
    %c0_i32_0 = arith.constant 0 : i32
    %c0_i32_1 = arith.constant 0 : i32
    return %c0_i32, %c0_i32_0 : i32, i32
  }
  func.func @transform_5(%arg0: i32) -> (i32, i32) {
    %c0_i32 = arith.constant 0 : i32
    %c0_i32_0 = arith.constant 0 : i32
    %c0_i32_1 = arith.constant 0 : i32
    return %c0_i32, %c0_i32_0 : i32, i32
  }
  func.func @transform_6(%arg0: i32) -> (i32, i32) {
    %c0_i32 = arith.constant 0 : i32
    %c0_i32_0 = arith.constant 0 : i32
    %c0_i32_1 = arith.constant 0 : i32
    return %c0_i32, %c0_i32_0 : i32, i32
  }
  func.func @transform_7(%arg0: i32) -> (i32, i32) {
    %c0_i32 = arith.constant 0 : i32
    %c0_i32_0 = arith.constant 0 : i32
    %c0_i32_1 = arith.constant 0 : i32
    return %c0_i32, %c0_i32_0 : i32, i32
  }
  func.func @transform_8(%arg0: i32) -> (i32, i32) {
    %c0_i32 = arith.constant 0 : i32
    %c0_i32_0 = arith.constant 0 : i32
    %c0_i32_1 = arith.constant 0 : i32
    return %c0_i32, %c0_i32_0 : i32, i32
  }
  func.func @transform_9(%arg0: i32) -> (i32, i32, i32) {
    %c0_i32 = arith.constant 0 : i32
    %c0_i32_0 = arith.constant 0 : i32
    %c0_i32_1 = arith.constant 0 : i32
    return %arg0, %c0_i32, %c0_i32_0 : i32, i32, i32
  }
}

</mosaic_0001>

<llo_original>
// kernel: tpu_custom_call.1
$region0: #{tpu_custom_call.1}
  #allocation0 [shape = 'u32[]', space=smem, size = 0x4, offset = 0x4, fixed_abs, tag = 'smem constant byte address 0x4 - core index']
  #allocation1 [shape = 'u32[72,128]{1,0:T(1,128)}', space=vmem, size = 0x9000, scoped, tag = 'internal scratch']
  %s0 = inlined_call_operand.vmem [shape: f32[8,12], index: 0, kind: input, shape index: {}]
  %s1 = inlined_call_operand.vmem [shape: bf16[12,64], index: 1, kind: input, shape index: {}]
  %s2 = inlined_call_operand.vmem [shape: f32[1,64], index: 2, kind: input, shape index: {}]
  %s3 = inlined_call_operand.vmem [shape: bf16[64,128], index: 3, kind: input, shape index: {}]
  %s4 = inlined_call_operand.vmem [shape: f32[1,128], index: 4, kind: input, shape index: {}]
  %s5 = inlined_call_operand.vmem [shape: bf16[128,32], index: 5, kind: input, shape index: {}]
  %s6 = inlined_call_operand.vmem [shape: f32[1,32], index: 6, kind: input, shape index: {}]
  %s7 = inlined_call_operand.vmem [shape: bf16[4,32], index: 7, kind: input, shape index: {}]
  %s8 = inlined_call_operand.vmem [shape: f32[4,1], index: 8, kind: input, shape index: {}]
  %s9 = inlined_call_operand.hbm [shape: f32[1,4,256], index: 9, kind: output, shape index: {}]
  %s10 = sld [smem:[#allocation0]]
  $region46: #{tpu_custom_call.1} parent=0
    _
  %s12 = ssub.s32 1, %s10
  %s13 = scalar_select 0, %s12, %s10
  $region1: #{tpu_custom_call.1} parent=0
    #allocation2 [shape = 'u8[4096]{0}', space=vmem, size = 0x1000, scoped, tag = 'output window, operand 0, single buffered']
    #allocation3 [shape = 's32[1]{0}', space=sflag, size = 0x4, scoped, tag = 'scoped memory for tpu_custom_call.1']
    %14 = vsyncpa [#allocation3], 0
    // Predicated region
    $region2: #{tpu_custom_call.1} parent=1 // pred_check
      _
    $region3: #{tpu_custom_call.1} parent=1 // pred_check_branch
      %16 = sbr.rel (0) target = $region5
    $region4: #{tpu_custom_call.1} parent=1 // pred_region
      _
    $region5: #{tpu_custom_call.1} parent=1 // pred_fallthru
      _
    // Predicated region
    $region6: #{tpu_custom_call.1} parent=1 // pred_check
      _
    $region7: #{tpu_custom_call.1} parent=1 // pred_check_branch
      %18 = sbr.rel (0) target = $region9
    $region8: #{tpu_custom_call.1} parent=1 // pred_region
      _
    $region9: #{tpu_custom_call.1} parent=1 // pred_fallthru
      _
    // Predicated region
    $region10: #{tpu_custom_call.1} parent=1 // pred_check
      _
    $region11: #{tpu_custom_call.1} parent=1 // pred_check_branch
      %20 = sbr.rel (0) target = $region13
    $region12: #{tpu_custom_call.1} parent=1 // pred_region
      _
    $region13: #{tpu_custom_call.1} parent=1 // pred_fallthru
      _
    // Predicated region
    $region14: #{tpu_custom_call.1} parent=1 // pred_check
      _
    $region15: #{tpu_custom_call.1} parent=1 // pred_check_branch
      %22 = sbr.rel (0) target = $region17
    $region16: #{tpu_custom_call.1} parent=1 // pred_region
      _
    $region17: #{tpu_custom_call.1} parent=1 // pred_fallthru
      _
    // Predicated region
    $region18: #{tpu_custom_call.1} parent=1 // pred_check
      _
    $region19: #{tpu_custom_call.1} parent=1 // pred_check_branch
      %24 = sbr.rel (0) target = $region21
    $region20: #{tpu_custom_call.1} parent=1 // pred_region
      _
    $region21: #{tpu_custom_call.1} parent=1 // pred_fallthru
      _
    // Predicated region
    $region22: #{tpu_custom_call.1} parent=1 // pred_check
      _
    $region23: #{tpu_custom_call.1} parent=1 // pred_check_branch
      %26 = sbr.rel (0) target = $region25
    $region24: #{tpu_custom_call.1} parent=1 // pred_region
      _
    $region25: #{tpu_custom_call.1} parent=1 // pred_fallthru
      _
    // Predicated region
    $region26: #{tpu_custom_call.1} parent=1 // pred_check
      _
    $region27: #{tpu_custom_call.1} parent=1 // pred_check_branch
      %28 = sbr.rel (0) target = $region29
    $region28: #{tpu_custom_call.1} parent=1 // pred_region
      _
    $region29: #{tpu_custom_call.1} parent=1 // pred_fallthru
      _
    // Predicated region
    $region30: #{tpu_custom_call.1} parent=1 // pred_check
      _
    $region31: #{tpu_custom_call.1} parent=1 // pred_check_branch
      %30 = sbr.rel (0) target = $region33
    $region32: #{tpu_custom_call.1} parent=1 // pred_region
      _
    $region33: #{tpu_custom_call.1} parent=1 // pred_fallthru
      _
    // Predicated region
    $region34: #{tpu_custom_call.1} parent=1 // pred_check
      _
    $region35: #{tpu_custom_call.1} parent=1 // pred_check_branch
      %32 = sbr.rel (0) target = $region37
    $region36: #{tpu_custom_call.1} parent=1 // pred_region
      _
    $region37: #{tpu_custom_call.1} parent=1 // pred_fallthru
      _
    %v34 = vld [vmem:[%s0] sm:$0xff]
    %v35 = vld [vmem:[%s0 + $0x8] sm:$0xff]
    %v36 = vld [vmem:[%s0 + $0x10] sm:$0xff]
    %v37 = vld [vmem:[%s0 + $0x18] sm:$0xff]
    %v38 = vld [vmem:[%s0 + $0x20] sm:$0xff]
    %v39 = vld [vmem:[%s0 + $0x28] sm:$0xff]
    %v40 = vld [vmem:[%s0 + $0x30] sm:$0xff]
    %v41 = vld [vmem:[%s0 + $0x38] sm:$0xff]
    %v42 = vld [vmem:[%s0 + $0x40] sm:$0xff]
    %v43 = vld [vmem:[%s0 + $0x48] sm:$0xff]
    %v44 = vld [vmem:[%s0 + $0x50] sm:$0xff]
    %v45 = vld [vmem:[%s0 + $0x58] sm:$0xff]
    %v46 = vld [vmem:[%s0 + $0x60] sm:$0xff]
    %v47 = vld [vmem:[%s0 + $0x68] sm:$0xff]
    %v48 = vld [vmem:[%s0 + $0x70] sm:$0xff]
    %v49 = vld [vmem:[%s0 + $0x78] sm:$0xff]
    %v50 = vld [vmem:[%s0 + $0x80] sm:$0xff]
    %v51 = vld [vmem:[%s0 + $0x88] sm:$0xff]
    %v52 = vld [vmem:[%s0 + $0x90] sm:$0xff]
    %v53 = vld [vmem:[%s0 + $0x98] sm:$0xff]
    %v54 = vld [vmem:[%s0 + $0xa0] sm:$0xff]
    %v55 = vld [vmem:[%s0 + $0xa8] sm:$0xff]
    %v56 = vld [vmem:[%s0 + $0xb0] sm:$0xff]
    %v57 = vld [vmem:[%s0 + $0xb8] sm:$0xff]
    %v58 = vld [vmem:[%s0 + $0xc0] sm:$0xff]
    %v59 = vld [vmem:[%s0 + $0xc8] sm:$0xff]
    %v60 = vld [vmem:[%s0 + $0xd0] sm:$0xff]
    %v61 = vld [vmem:[%s0 + $0xd8] sm:$0xff]
    %v62 = vld [vmem:[%s0 + $0xe0] sm:$0xff]
    %v63 = vld [vmem:[%s0 + $0xe8] sm:$0xff]
    %v64 = vld [vmem:[%s0 + $0xf0] sm:$0xff]
    %v65 = vld [vmem:[%s0 + $0xf8] sm:$0xff]
    %v66 = vpack.c.bf16 %v35, %v34
    %v67 = vpack.c.bf16 %v37, %v36
    %v68 = vpack.c.bf16 %v39, %v38
    %v69 = vpack.c.bf16 %v41, %v40
    %v70 = vpack.c.bf16 %v43, %v42
    %v71 = vpack.c.bf16 %v45, %v44
    %v72 = vpack.c.bf16 %v47, %v46
    %v73 = vpack.c.bf16 %v49, %v48
    %v74 = vpack.c.bf16 %v51, %v50
    %v75 = vpack.c.bf16 %v53, %v52
    %v76 = vpack.c.bf16 %v55, %v54
    %v77 = vpack.c.bf16 %v57, %v56
    %v78 = vpack.c.bf16 %v59, %v58
    %v79 = vpack.c.bf16 %v61, %v60
    %v80 = vpack.c.bf16 %v63, %v62
    %v81 = vpack.c.bf16 %v65, %v64
    %v82 = vld [vmem:[%s1] sm:$0xf]
    %v83 = vld [vmem:[%s1 + $0x4] sm:$0x3]
    %v84 = vld [vmem:[%s2] sm:$0x1]
    %v86 = vperm.slane %v84, 0
    %v90 = vunpack.c.l.b16 %v82
    %v91 = vunpack.c.l.b16 %v83
    %v92 = vpack.c.b16 %v91, %v90
    %vm93 = vcmask 97280
    %v95 = vsel %vm93, %v66, 0
    %v98 = vsel %vm93, %v67, 0
    %v101 = vsel %vm93, %v68, 0
    %v104 = vsel %vm93, %v69, 0
    %v107 = vsel %vm93, %v70, 0
    %v110 = vsel %vm93, %v71, 0
    %v113 = vsel %vm93, %v72, 0
    %v116 = vsel %vm93, %v73, 0
    %v119 = vsel %vm93, %v74, 0
    %v122 = vsel %vm93, %v75, 0
    %v125 = vsel %vm93, %v76, 0
    %v128 = vsel %vm93, %v77, 0
    %v131 = vsel %vm93, %v78, 0
    %v134 = vsel %vm93, %v79, 0
    %v137 = vsel %vm93, %v80, 0
    %v140 = vsel %vm93, %v81, 0
    %vm142 = vcmask 1045504
    %v144 = vsel %vm142, %v92, 0
    %146 = vmatpush.bf16.msra.mxu0 0
    %147 = vmatpush.bf16.msra.mxu0 0
    %148 = vmatpush.bf16.msra.mxu0 0
    %149 = vmatpush.bf16.msra.mxu0 0
    %150 = vmatpush.bf16.msra.mxu0 0
    %151 = vmatpush.bf16.msra.mxu0 0
    %152 = vmatpush.bf16.msra.mxu0 0
    %153 = vmatpush.bf16.msra.mxu0 %v144
    %154 = vmatmul.bf16.gmra.mxu0 %v95
    %v155 = vpop.f32.mrf.mxu0
    %v156 = vadd.f32 %v86, %v155
    %v157 = vpop.f32.mrf.mxu0
    %v158 = vadd.f32 %v86, %v157
    %159 = vmatmul.bf16.gmra.mxu0 %v98
    %v160 = vpop.f32.mrf.mxu0
    %v161 = vadd.f32 %v86, %v160
    %v162 = vpop.f32.mrf.mxu0
    %v163 = vadd.f32 %v86, %v162
    %164 = vmatmul.bf16.gmra.mxu0 %v101
    %v165 = vpop.f32.mrf.mxu0
    %v166 = vadd.f32 %v86, %v165
    %v167 = vpop.f32.mrf.mxu0
    %v168 = vadd.f32 %v86, %v167
    %169 = vmatmul.bf16.gmra.mxu0 %v104
    %v170 = vpop.f32.mrf.mxu0
    %v171 = vadd.f32 %v86, %v170
    %v172 = vpop.f32.mrf.mxu0
    %v173 = vadd.f32 %v86, %v172
    %174 = vmatmul.bf16.gmra.mxu0 %v107
    %v175 = vpop.f32.mrf.mxu0
    %v176 = vadd.f32 %v86, %v175
    %v177 = vpop.f32.mrf.mxu0
    %v178 = vadd.f32 %v86, %v177
    %179 = vmatmul.bf16.gmra.mxu0 %v110
    %v180 = vpop.f32.mrf.mxu0
    %v181 = vadd.f32 %v86, %v180
    %v182 = vpop.f32.mrf.mxu0
    %v183 = vadd.f32 %v86, %v182
    %184 = vmatmul.bf16.gmra.mxu0 %v113
    %v185 = vpop.f32.mrf.mxu0
    %v186 = vadd.f32 %v86, %v185
    %v187 = vpop.f32.mrf.mxu0
    %v188 = vadd.f32 %v86, %v187
    %189 = vmatmul.bf16.gmra.mxu0 %v116
    %v190 = vpop.f32.mrf.mxu0
    %v191 = vadd.f32 %v86, %v190
    %v192 = vpop.f32.mrf.mxu0
    %v193 = vadd.f32 %v86, %v192
    %194 = vmatmul.bf16.gmra.mxu0 %v119
    %v195 = vpop.f32.mrf.mxu0
    %v196 = vadd.f32 %v86, %v195
    %v197 = vpop.f32.mrf.mxu0
    %v198 = vadd.f32 %v86, %v197
    %199 = vmatmul.bf16.gmra.mxu0 %v122
    %v200 = vpop.f32.mrf.mxu0
    %v201 = vadd.f32 %v86, %v200
    %v202 = vpop.f32.mrf.mxu0
    %v203 = vadd.f32 %v86, %v202
    %204 = vmatmul.bf16.gmra.mxu0 %v125
    %v205 = vpop.f32.mrf.mxu0
    %v206 = vadd.f32 %v86, %v205
    %v207 = vpop.f32.mrf.mxu0
    %v208 = vadd.f32 %v86, %v207
    %209 = vmatmul.bf16.gmra.mxu0 %v128
    %v210 = vpop.f32.mrf.mxu0
    %v211 = vadd.f32 %v86, %v210
    %v212 = vpop.f32.mrf.mxu0
    %v213 = vadd.f32 %v86, %v212
    %214 = vmatmul.bf16.gmra.mxu0 %v131
    %v215 = vpop.f32.mrf.mxu0
    %v216 = vadd.f32 %v86, %v215
    %v217 = vpop.f32.mrf.mxu0
    %v218 = vadd.f32 %v86, %v217
    %219 = vmatmul.bf16.gmra.mxu0 %v134
    %v220 = vpop.f32.mrf.mxu0
    %v221 = vadd.f32 %v86, %v220
    %v222 = vpop.f32.mrf.mxu0
    %v223 = vadd.f32 %v86, %v222
    %224 = vmatmul.bf16.gmra.mxu0 %v137
    %v225 = vpop.f32.mrf.mxu0
    %v226 = vadd.f32 %v86, %v225
    %v227 = vpop.f32.mrf.mxu0
    %v228 = vadd.f32 %v86, %v227
    %229 = vmatmul.bf16.gmra.mxu0 %v140
    %v230 = vpop.f32.mrf.mxu0
    %v231 = vadd.f32 %v86, %v230
    %v232 = vpop.f32.mrf.mxu0
    %v233 = vadd.f32 %v86, %v232
    %234 = vdwg.mxu0
    %v235 = vmax.f32 %v156, 0.0
    %v236 = vmax.f32 %v158, 0.0
    %v237 = vmax.f32 %v161, 0.0
    %v238 = vmax.f32 %v163, 0.0
    %v239 = vmax.f32 %v166, 0.0
    %v240 = vmax.f32 %v168, 0.0
    %v241 = vmax.f32 %v171, 0.0
    %v242 = vmax.f32 %v173, 0.0
    %v243 = vmax.f32 %v176, 0.0
    %v244 = vmax.f32 %v178, 0.0
    %v245 = vmax.f32 %v181, 0.0
    %v246 = vmax.f32 %v183, 0.0
    %v247 = vmax.f32 %v186, 0.0
    %v248 = vmax.f32 %v188, 0.0
    %v249 = vmax.f32 %v191, 0.0
    %v250 = vmax.f32 %v193, 0.0
    %v251 = vmax.f32 %v196, 0.0
    %v252 = vmax.f32 %v198, 0.0
    %v253 = vmax.f32 %v201, 0.0
    %v254 = vmax.f32 %v203, 0.0
    %v255 = vmax.f32 %v206, 0.0
    %v256 = vmax.f32 %v208, 0.0
    %v257 = vmax.f32 %v211, 0.0
    %v258 = vmax.f32 %v213, 0.0
    %v259 = vmax.f32 %v216, 0.0
    %v260 = vmax.f32 %v218, 0.0
    %v261 = vmax.f32 %v221, 0.0
    %v262 = vmax.f32 %v223, 0.0
    %v263 = vmax.f32 %v226, 0.0
    %v264 = vmax.f32 %v228, 0.0
    %v265 = vmax.f32 %v231, 0.0
    %v266 = vmax.f32 %v233, 0.0
    %v267 = vpack.c.bf16 %v236, %v235
    %v268 = vpack.c.bf16 %v238, %v237
    %v269 = vpack.c.bf16 %v240, %v239
    %v270 = vpack.c.bf16 %v242, %v241
    %v271 = vpack.c.bf16 %v244, %v243
    %v272 = vpack.c.bf16 %v246, %v245
    %v273 = vpack.c.bf16 %v248, %v247
    %v274 = vpack.c.bf16 %v250, %v249
    %v275 = vpack.c.bf16 %v252, %v251
    %v276 = vpack.c.bf16 %v254, %v253
    %v277 = vpack.c.bf16 %v256, %v255
    %v278 = vpack.c.bf16 %v258, %v257
    %v279 = vpack.c.bf16 %v260, %v259
    %v280 = vpack.c.bf16 %v262, %v261
    %v281 = vpack.c.bf16 %v264, %v263
    %v282 = vpack.c.bf16 %v266, %v265
    %v283 = vld [vmem:[%s3] sm:$0xf]
    %v284 = vld [vmem:[%s3 + $0x4] sm:$0xf]
    %v285 = vld [vmem:[%s3 + $0x8] sm:$0xf]
    %v286 = vld [vmem:[%s3 + $0xc] sm:$0xf]
    %v287 = vld [vmem:[%s3 + $0x10] sm:$0xf]
    %v288 = vld [vmem:[%s3 + $0x14] sm:$0xf]
    %v289 = vld [vmem:[%s3 + $0x18] sm:$0xf]
    %v290 = vld [vmem:[%s3 + $0x1c] sm:$0xf]
    %v291 = vld [vmem:[%s4] sm:$0x1]
    %v293 = vperm.slane %v291, 0
    %v303 = vunpack.c.l.b16 %v283
    %v304 = vunpack.c.l.b16 %v284
    %v305 = vunpack.c.l.b16 %v285
    %v306 = vunpack.c.l.b16 %v286
    %v307 = vunpack.c.l.b16 %v287
    %v308 = vunpack.c.l.b16 %v288
    %v309 = vunpack.c.l.b16 %v289
    %v310 = vunpack.c.l.b16 %v290
    %v311 = vpack.c.b16 %v304, %v303
    %v312 = vpack.c.b16 %v306, %v305
    %v313 = vpack.c.b16 %v308, %v307
    %v314 = vpack.c.b16 %v310, %v309
    %vm319 = vcmask 523264
    %v321 = vsel %vm319, %v267, 0
    %v324 = vsel %vm319, %v268, 0
    %v327 = vsel %vm319, %v269, 0
    %v330 = vsel %vm319, %v270, 0
    %v333 = vsel %vm319, %v271, 0
    %v336 = vsel %vm319, %v272, 0
    %v339 = vsel %vm319, %v273, 0
    %v342 = vsel %vm319, %v274, 0
    %v345 = vsel %vm319, %v275, 0
    %v348 = vsel %vm319, %v276, 0
    %v351 = vsel %vm319, %v277, 0
    %v354 = vsel %vm319, %v278, 0
    %v357 = vsel %vm319, %v279, 0
    %v360 = vsel %vm319, %v280, 0
    %v363 = vsel %vm319, %v281, 0
    %v366 = vsel %vm319, %v282, 0
    %368 = vmatpush.bf16.msra.mxu0 0
    %369 = vmatpush.bf16.msra.mxu0 0
    %370 = vmatpush.bf16.msra.mxu0 0
    %371 = vmatpush.bf16.msra.mxu0 0
    %372 = vmatpush.bf16.msra.mxu0 %v314
    %373 = vmatpush.bf16.msra.mxu0 %v313
    %374 = vmatpush.bf16.msra.mxu0 %v312
    %375 = vmatpush.bf16.msra.mxu0 %v311
    %376 = vmatmul.bf16.gmra.mxu0 %v321
    %v377 = vpop.f32.mrf.mxu0
    %v378 = vadd.f32 %v293, %v377
    %v379 = vpop.f32.mrf.mxu0
    %v380 = vadd.f32 %v293, %v379
    %381 = vmatmul.bf16.gmra.mxu0 %v324
    %v382 = vpop.f32.mrf.mxu0
    %v383 = vadd.f32 %v293, %v382
    %v384 = vpop.f32.mrf.mxu0
    %v385 = vadd.f32 %v293, %v384
    %386 = vmatmul.bf16.gmra.mxu0 %v327
    %v387 = vpop.f32.mrf.mxu0
    %v388 = vadd.f32 %v293, %v387
    %v389 = vpop.f32.mrf.mxu0
    %v390 = vadd.f32 %v293, %v389
    %391 = vmatmul.bf16.gmra.mxu0 %v330
    %v392 = vpop.f32.mrf.mxu0
    %v393 = vadd.f32 %v293, %v392
    %v394 = vpop.f32.mrf.mxu0
    %v395 = vadd.f32 %v293, %v394
    %396 = vmatmul.bf16.gmra.mxu0 %v333
    %v397 = vpop.f32.mrf.mxu0
    %v398 = vadd.f32 %v293, %v397
    %v399 = vpop.f32.mrf.mxu0
    %v400 = vadd.f32 %v293, %v399
    %401 = vmatmul.bf16.gmra.mxu0 %v336
    %v402 = vpop.f32.mrf.mxu0
    %v403 = vadd.f32 %v293, %v402
    %v404 = vpop.f32.mrf.mxu0
    %v405 = vadd.f32 %v293, %v404
    %406 = vmatmul.bf16.gmra.mxu0 %v339
    %v407 = vpop.f32.mrf.mxu0
    %v408 = vadd.f32 %v293, %v407
    %v409 = vpop.f32.mrf.mxu0
    %v410 = vadd.f32 %v293, %v409
    %411 = vmatmul.bf16.gmra.mxu0 %v342
    %v412 = vpop.f32.mrf.mxu0
    %v413 = vadd.f32 %v293, %v412
    %v414 = vpop.f32.mrf.mxu0
    %v415 = vadd.f32 %v293, %v414
    %416 = vmatmul.bf16.gmra.mxu0 %v345
    %v417 = vpop.f32.mrf.mxu0
    %v418 = vadd.f32 %v293, %v417
    %v419 = vpop.f32.mrf.mxu0
    %v420 = vadd.f32 %v293, %v419
    %421 = vmatmul.bf16.gmra.mxu0 %v348
    %v422 = vpop.f32.mrf.mxu0
    %v423 = vadd.f32 %v293, %v422
    %v424 = vpop.f32.mrf.mxu0
    %v425 = vadd.f32 %v293, %v424
    %426 = vmatmul.bf16.gmra.mxu0 %v351
    %v427 = vpop.f32.mrf.mxu0
    %v428 = vadd.f32 %v293, %v427
    %v429 = vpop.f32.mrf.mxu0
    %v430 = vadd.f32 %v293, %v429
    %431 = vmatmul.bf16.gmra.mxu0 %v354
    %v432 = vpop.f32.mrf.mxu0
    %v433 = vadd.f32 %v293, %v432
    %v434 = vpop.f32.mrf.mxu0
    %v435 = vadd.f32 %v293, %v434
    %436 = vmatmul.bf16.gmra.mxu0 %v357
    %v437 = vpop.f32.mrf.mxu0
    %v438 = vadd.f32 %v293, %v437
    %v439 = vpop.f32.mrf.mxu0
    %v440 = vadd.f32 %v293, %v439
    %441 = vmatmul.bf16.gmra.mxu0 %v360
    %v442 = vpop.f32.mrf.mxu0
    %v443 = vadd.f32 %v293, %v442
    %v444 = vpop.f32.mrf.mxu0
    %v445 = vadd.f32 %v293, %v444
    %446 = vmatmul.bf16.gmra.mxu0 %v363
    %v447 = vpop.f32.mrf.mxu0
    %v448 = vadd.f32 %v293, %v447
    %v449 = vpop.f32.mrf.mxu0
    %v450 = vadd.f32 %v293, %v449
    %451 = vmatmul.bf16.gmra.mxu0 %v366
    %v452 = vpop.f32.mrf.mxu0
    %v453 = vadd.f32 %v293, %v452
    %v454 = vpop.f32.mrf.mxu0
    %v455 = vadd.f32 %v293, %v454
    %456 = vdwg.mxu0
    %v457 = vmax.f32 %v378, 0.0
    %v458 = vmax.f32 %v380, 0.0
    %v459 = vmax.f32 %v383, 0.0
    %v460 = vmax.f32 %v385, 0.0
    %v461 = vmax.f32 %v388, 0.0
    %v462 = vmax.f32 %v390, 0.0
    %v463 = vmax.f32 %v393, 0.0
    %v464 = vmax.f32 %v395, 0.0
    %v465 = vmax.f32 %v398, 0.0
    %v466 = vmax.f32 %v400, 0.0
    %v467 = vmax.f32 %v403, 0.0
    %v468 = vmax.f32 %v405, 0.0
    %v469 = vmax.f32 %v408, 0.0
    %v470 = vmax.f32 %v410, 0.0
    %v471 = vmax.f32 %v413, 0.0
    %v472 = vmax.f32 %v415, 0.0
    %v473 = vmax.f32 %v418, 0.0
    %v474 = vmax.f32 %v420, 0.0
    %v475 = vmax.f32 %v423, 0.0
    %v476 = vmax.f32 %v425, 0.0
    %v477 = vmax.f32 %v428, 0.0
    %v478 = vmax.f32 %v430, 0.0
    %v479 = vmax.f32 %v433, 0.0
    %v480 = vmax.f32 %v435, 0.0
    %v481 = vmax.f32 %v438, 0.0
    %v482 = vmax.f32 %v440, 0.0
    %v483 = vmax.f32 %v443, 0.0
    %v484 = vmax.f32 %v445, 0.0
    %v485 = vmax.f32 %v448, 0.0
    %v486 = vmax.f32 %v450, 0.0
    %v487 = vmax.f32 %v453, 0.0
    %v488 = vmax.f32 %v455, 0.0
    %v489 = vpack.c.bf16 %v458, %v457
    %v490 = vpack.c.bf16 %v460, %v459
    %v491 = vpack.c.bf16 %v462, %v461
    %v492 = vpack.c.bf16 %v464, %v463
    %v493 = vpack.c.bf16 %v466, %v465
    %v494 = vpack.c.bf16 %v468, %v467
    %v495 = vpack.c.bf16 %v470, %v469
    %v496 = vpack.c.bf16 %v472, %v471
    %v497 = vpack.c.bf16 %v474, %v473
    %v498 = vpack.c.bf16 %v476, %v475
    %v499 = vpack.c.bf16 %v478, %v477
    %v500 = vpack.c.bf16 %v480, %v479
    %v501 = vpack.c.bf16 %v482, %v481
    %v502 = vpack.c.bf16 %v484, %v483
    %v503 = vpack.c.bf16 %v486, %v485
    %v504 = vpack.c.bf16 %v488, %v487
    %v505 = vld [vmem:[%s5] sm:$0xf]
    %v506 = vld [vmem:[%s5 + $0x4] sm:$0xf]
    %v507 = vld [vmem:[%s5 + $0x8] sm:$0xf]
    %v508 = vld [vmem:[%s5 + $0xc] sm:$0xf]
    %v509 = vld [vmem:[%s5 + $0x10] sm:$0xf]
    %v510 = vld [vmem:[%s5 + $0x14] sm:$0xf]
    %v511 = vld [vmem:[%s5 + $0x18] sm:$0xf]
    %v512 = vld [vmem:[%s5 + $0x1c] sm:$0xf]
    %v513 = vld [vmem:[%s5 + $0x20] sm:$0xf]
    %v514 = vld [vmem:[%s5 + $0x24] sm:$0xf]
    %v515 = vld [vmem:[%s5 + $0x28] sm:$0xf]
    %v516 = vld [vmem:[%s5 + $0x2c] sm:$0xf]
    %v517 = vld [vmem:[%s5 + $0x30] sm:$0xf]
    %v518 = vld [vmem:[%s5 + $0x34] sm:$0xf]
    %v519 = vld [vmem:[%s5 + $0x38] sm:$0xf]
    %v520 = vld [vmem:[%s5 + $0x3c] sm:$0xf]
    %v521 = vld [vmem:[%s6] sm:$0x1]
    %v523 = vperm.slane %v521, 0
    %v541 = vunpack.c.l.b16 %v505
    %v542 = vunpack.c.l.b16 %v506
    %v543 = vunpack.c.l.b16 %v507
    %v544 = vunpack.c.l.b16 %v508
    %v545 = vunpack.c.l.b16 %v509
    %v546 = vunpack.c.l.b16 %v510
    %v547 = vunpack.c.l.b16 %v511
    %v548 = vunpack.c.l.b16 %v512
    %v549 = vunpack.c.l.b16 %v513
    %v550 = vunpack.c.l.b16 %v514
    %v551 = vunpack.c.l.b16 %v515
    %v552 = vunpack.c.l.b16 %v516
    %v553 = vunpack.c.l.b16 %v517
    %v554 = vunpack.c.l.b16 %v518
    %v555 = vunpack.c.l.b16 %v519
    %v556 = vunpack.c.l.b16 %v520
    %v557 = vpack.c.b16 %v542, %v541
    %v558 = vpack.c.b16 %v544, %v543
    %v559 = vpack.c.b16 %v546, %v545
    %v560 = vpack.c.b16 %v548, %v547
    %v561 = vpack.c.b16 %v550, %v549
    %v562 = vpack.c.b16 %v552, %v551
    %v563 = vpack.c.b16 %v554, %v553
    %v564 = vpack.c.b16 %v556, %v555
    %573 = vmatpush.bf16.msra.mxu0 %v564
    %574 = vmatpush.bf16.msra.mxu0 %v563
    %575 = vmatpush.bf16.msra.mxu0 %v562
    %576 = vmatpush.bf16.msra.mxu0 %v561
    %577 = vmatpush.bf16.msra.mxu0 %v560
    %578 = vmatpush.bf16.msra.mxu0 %v559
    %579 = vmatpush.bf16.msra.mxu0 %v558
    %580 = vmatpush.bf16.msra.mxu0 %v557
    %581 = vmatmul.bf16.gmra.mxu0 %v489
    %v582 = vpop.f32.mrf.mxu0
    %v583 = vadd.f32 %v523, %v582
    %v584 = vpop.f32.mrf.mxu0
    %v585 = vadd.f32 %v523, %v584
    %586 = vmatmul.bf16.gmra.mxu0 %v490
    %v587 = vpop.f32.mrf.mxu0
    %v588 = vadd.f32 %v523, %v587
    %v589 = vpop.f32.mrf.mxu0
    %v590 = vadd.f32 %v523, %v589
    %591 = vmatmul.bf16.gmra.mxu0 %v491
    %v592 = vpop.f32.mrf.mxu0
    %v593 = vadd.f32 %v523, %v592
    %v594 = vpop.f32.mrf.mxu0
    %v595 = vadd.f32 %v523, %v594
    %596 = vmatmul.bf16.gmra.mxu0 %v492
    %v597 = vpop.f32.mrf.mxu0
    %v598 = vadd.f32 %v523, %v597
    %v599 = vpop.f32.mrf.mxu0
    %v600 = vadd.f32 %v523, %v599
    %601 = vmatmul.bf16.gmra.mxu0 %v493
    %v602 = vpop.f32.mrf.mxu0
    %v603 = vadd.f32 %v523, %v602
    %v604 = vpop.f32.mrf.mxu0
    %v605 = vadd.f32 %v523, %v604
    %606 = vmatmul.bf16.gmra.mxu0 %v494
    %v607 = vpop.f32.mrf.mxu0
    %v608 = vadd.f32 %v523, %v607
    %v609 = vpop.f32.mrf.mxu0
    %v610 = vadd.f32 %v523, %v609
    %611 = vmatmul.bf16.gmra.mxu0 %v495
    %v612 = vpop.f32.mrf.mxu0
    %v613 = vadd.f32 %v523, %v612
    %v614 = vpop.f32.mrf.mxu0
    %v615 = vadd.f32 %v523, %v614
    %616 = vmatmul.bf16.gmra.mxu0 %v496
    %v617 = vpop.f32.mrf.mxu0
    %v618 = vadd.f32 %v523, %v617
    %v619 = vpop.f32.mrf.mxu0
    %v620 = vadd.f32 %v523, %v619
    %621 = vmatmul.bf16.gmra.mxu0 %v497
    %v622 = vpop.f32.mrf.mxu0
    %v623 = vadd.f32 %v523, %v622
    %v624 = vpop.f32.mrf.mxu0
    %v625 = vadd.f32 %v523, %v624
    %626 = vmatmul.bf16.gmra.mxu0 %v498
    %v627 = vpop.f32.mrf.mxu0
    %v628 = vadd.f32 %v523, %v627
    %v629 = vpop.f32.mrf.mxu0
    %v630 = vadd.f32 %v523, %v629
    %631 = vmatmul.bf16.gmra.mxu0 %v499
    %v632 = vpop.f32.mrf.mxu0
    %v633 = vadd.f32 %v523, %v632
    %v634 = vpop.f32.mrf.mxu0
    %v635 = vadd.f32 %v523, %v634
    %636 = vmatmul.bf16.gmra.mxu0 %v500
    %v637 = vpop.f32.mrf.mxu0
    %v638 = vadd.f32 %v523, %v637
    %v639 = vpop.f32.mrf.mxu0
    %v640 = vadd.f32 %v523, %v639
    %641 = vmatmul.bf16.gmra.mxu0 %v501
    %v642 = vpop.f32.mrf.mxu0
    %v643 = vadd.f32 %v523, %v642
    %v644 = vpop.f32.mrf.mxu0
    %v645 = vadd.f32 %v523, %v644
    %646 = vmatmul.bf16.gmra.mxu0 %v502
    %v647 = vpop.f32.mrf.mxu0
    %v648 = vadd.f32 %v523, %v647
    %v649 = vpop.f32.mrf.mxu0
    %v650 = vadd.f32 %v523, %v649
    %651 = vmatmul.bf16.gmra.mxu0 %v503
    %v652 = vpop.f32.mrf.mxu0
    %v653 = vadd.f32 %v523, %v652
    %v654 = vpop.f32.mrf.mxu0
    %v655 = vadd.f32 %v523, %v654
    %656 = vmatmul.bf16.gmra.mxu0 %v504
    %v657 = vpop.f32.mrf.mxu0
    %v658 = vadd.f32 %v523, %v657
    %v659 = vpop.f32.mrf.mxu0
    %v660 = vadd.f32 %v523, %v659
    %661 = vdwg.mxu0
    %v662 = vmax.f32 %v583, 0.0
    %v663 = vmax.f32 %v585, 0.0
    %v664 = vmax.f32 %v588, 0.0
    %v665 = vmax.f32 %v590, 0.0
    %v666 = vmax.f32 %v593, 0.0
    %v667 = vmax.f32 %v595, 0.0
    %v668 = vmax.f32 %v598, 0.0
    %v669 = vmax.f32 %v600, 0.0
    %v670 = vmax.f32 %v603, 0.0
    %v671 = vmax.f32 %v605, 0.0
    %v672 = vmax.f32 %v608, 0.0
    %v673 = vmax.f32 %v610, 0.0
    %v674 = vmax.f32 %v613, 0.0
    %v675 = vmax.f32 %v615, 0.0
    %v676 = vmax.f32 %v618, 0.0
    %v677 = vmax.f32 %v620, 0.0
    %v678 = vmax.f32 %v623, 0.0
    %v679 = vmax.f32 %v625, 0.0
    %v680 = vmax.f32 %v628, 0.0
    %v681 = vmax.f32 %v630, 0.0
    %v682 = vmax.f32 %v633, 0.0
    %v683 = vmax.f32 %v635, 0.0
    %v684 = vmax.f32 %v638, 0.0
    %v685 = vmax.f32 %v640, 0.0
    %v686 = vmax.f32 %v643, 0.0
    %v687 = vmax.f32 %v645, 0.0
    %v688 = vmax.f32 %v648, 0.0
    %v689 = vmax.f32 %v650, 0.0
    %v690 = vmax.f32 %v653, 0.0
    %v691 = vmax.f32 %v655, 0.0
    %v692 = vmax.f32 %v658, 0.0
    %v693 = vmax.f32 %v660, 0.0
    %v694 = vpack.c.bf16 %v663, %v662
    %v695 = vpack.c.bf16 %v665, %v664
    %v696 = vpack.c.bf16 %v667, %v666
    %v697 = vpack.c.bf16 %v669, %v668
    %v698 = vpack.c.bf16 %v671, %v670
    %v699 = vpack.c.bf16 %v673, %v672
    %v700 = vpack.c.bf16 %v675, %v674
    %v701 = vpack.c.bf16 %v677, %v676
    %v702 = vpack.c.bf16 %v679, %v678
    %v703 = vpack.c.bf16 %v681, %v680
    %v704 = vpack.c.bf16 %v683, %v682
    %v705 = vpack.c.bf16 %v685, %v684
    %v706 = vpack.c.bf16 %v687, %v686
    %v707 = vpack.c.bf16 %v689, %v688
    %v708 = vpack.c.bf16 %v691, %v690
    %v709 = vpack.c.bf16 %v693, %v692
    %v710 = vld [vmem:[%s7] sm:$0x3]
    %v711 = vld [vmem:[%s8] sm:$0xf]
    %713 = vset.pattern.permute.xlu0 0
    %714 = vperm.xlu0 %713, %v711
    %v715 = vpop.permute.xlu0 %714
    %vm717 = vcmask 261120
    %v719 = vsel %vm717, %v710, 0
    %v722 = vsel %vm717, %v694, 0
    %v725 = vsel %vm717, %v695, 0
    %v728 = vsel %vm717, %v696, 0
    %v731 = vsel %vm717, %v697, 0
    %v734 = vsel %vm717, %v698, 0
    %v737 = vsel %vm717, %v699, 0
    %v740 = vsel %vm717, %v700, 0
    %v743 = vsel %vm717, %v701, 0
    %v746 = vsel %vm717, %v702, 0
    %v749 = vsel %vm717, %v703, 0
    %v752 = vsel %vm717, %v704, 0
    %v755 = vsel %vm717, %v705, 0
    %v758 = vsel %vm717, %v706, 0
    %v761 = vsel %vm717, %v707, 0
    %v764 = vsel %vm717, %v708, 0
    %v767 = vsel %vm717, %v709, 0
    %769 = vmatpush.bf16.xpose.msra.mxu0 %v743
    %770 = vmatpush.bf16.xpose.msra.mxu0 %v740
    %771 = vmatpush.bf16.xpose.msra.mxu0 %v737
    %772 = vmatpush.bf16.xpose.msra.mxu0 %v734
    %773 = vmatpush.bf16.xpose.msra.mxu0 %v731
    %774 = vmatpush.bf16.xpose.msra.mxu0 %v728
    %775 = vmatpush.bf16.xpose.msra.mxu0 %v725
    %776 = vmatpush.bf16.xpose.msra.mxu0 %v722
    %777 = vmatmul.bf16.gmra.mxu0 %v719
    %v778 = vpop.f32.mrf.mxu0
    %v779 = vadd.f32 %v715, %v778
    %v780 = vpop.f32.mrf.mxu0
    %781 = vdwg.mxu0
    %782 = vmatpush.bf16.xpose.msra.mxu0 %v767
    %783 = vmatpush.bf16.xpose.msra.mxu0 %v764
    %784 = vmatpush.bf16.xpose.msra.mxu0 %v761
    %785 = vmatpush.bf16.xpose.msra.mxu0 %v758
    %786 = vmatpush.bf16.xpose.msra.mxu0 %v755
    %787 = vmatpush.bf16.xpose.msra.mxu0 %v752
    %788 = vmatpush.bf16.xpose.msra.mxu0 %v749
    %789 = vmatpush.bf16.xpose.msra.mxu0 %v746
    %790 = vmatmul.bf16.gmra.mxu0 %v719
    %v791 = vpop.f32.mrf.mxu0
    %v792 = vadd.f32 %v715, %v791
    %v793 = vpop.f32.mrf.mxu0
    %794 = vdwg.mxu0
    %v797 = vrot.slane %v792, 4
    %vm798 = vcmask 1043456
    %v799 = vsel %vm798, %v779, %v797
    %801 = vst [vmem:[#allocation2] sm:$0xff] %v799
    // Predicated region
    $region38: #{tpu_custom_call.1} parent=1 // pred_check
      _
    $region39: #{tpu_custom_call.1} parent=1 // pred_check_branch
      %803 = sbr.rel (0) target = $region41
    $region40: #{tpu_custom_call.1} parent=1 // pred_region
      %805 = vsyncadd [#allocation3], 0
      %s807 = sshll.u32 [#allocation2], 4
      %s808 = int_to_ptr.vmem [resolvable:$true] %s807
      %s809 = sshll.u32 %s9, 4
      %s810 = int_to_ptr.hbm [resolvable:$true] %s809
      %812 = dma.vmem_to_hbm [thread:$0]  %s808, 128, %s810, [#allocation3]
    $region41: #{tpu_custom_call.1} parent=1 // pred_fallthru
      _
    // Predicated region
    $region42: #{tpu_custom_call.1} parent=1 // pred_check
      _
    $region43: #{tpu_custom_call.1} parent=1 // pred_check_branch
      %814 = sbr.rel (0) target = $region45
    $region44: #{tpu_custom_call.1} parent=1 // pred_region
      %816 = dma.done [#allocation3], 128
    $region45: #{tpu_custom_call.1} parent=1 // pred_fallthru
      _
    %817 = vsyncpa [#allocation3], 1

</llo_original>
